<compile_context>
chip_gen: v5e
topology: v5e:2x2
jax: 0.10.0
libtpu: 0.0.40
codegen_flags: <defaults>
</compile_context>

<pallas_src>
import jax
import jax.numpy as jnp
from jax import lax
from jax.experimental import pallas as pl
from jax.experimental.pallas import tpu as pltpu

INPUT_DIM = 64          # self.input_dim
HIDDEN = 64             # LSTM hidden size
OUTPUT_DIM = 2 * 64     # self.output_dim
N_ITERS = 6
N_LAYERS = 3


def _gates_to_hc(gates, c_prev):
    """LSTM cell update from pre-activation gates (B, 4*HIDDEN).

    Gate columns are pre-ordered (i, f, o, g) so the three sigmoids are one
    contiguous 3H-wide EUP push and the tanh is one H-wide push.
    """
    sig = jax.nn.sigmoid(gates[:, : 3 * HIDDEN])
    i = sig[:, 0 * HIDDEN:1 * HIDDEN]
    f = sig[:, 1 * HIDDEN:2 * HIDDEN]
    o = sig[:, 2 * HIDDEN:3 * HIDDEN]
    g = jnp.tanh(gates[:, 3 * HIDDEN:4 * HIDDEN])
    c_new = f * c_prev + i * g
    h_new = o * jnp.tanh(c_new)
    return h_new, c_new


def set2set_kernel(feat_ref,
                   wih0_ref, whh0_ref, b0_ref,
                   wih1_ref, whh1_ref, b1_ref,
                   wih2_ref, whh2_ref, b2_ref,
                   out_ref):
    TB = feat_ref.shape[0]

    wih0 = wih0_ref[...]                      # (2H, 4H) — split to avoid concat of q_star
    wih0_q = wih0[:HIDDEN, :]                 # acts on q  (first half of q_star)
    wih0_r = wih0[HIDDEN:, :]                 # acts on readout (second half)
    whh0 = whh0_ref[...]
    b0 = b0_ref[...]
    wih1 = wih1_ref[...]
    whh1 = whh1_ref[...]
    b1 = b1_ref[...]
    wih2 = wih2_ref[...]
    whh2 = whh2_ref[...]
    b2 = b2_ref[...]

    zeros = jnp.zeros((TB, HIDDEN), jnp.float32)
    carry0 = (zeros, zeros, zeros,            # h0, h1, h2
              zeros, zeros, zeros,            # c0, c1, c2
              zeros, zeros)                   # q, readout

    def body(_, carry):
        h0, h1, h2, c0, c1, c2, q, readout = carry

        # ---- 3-layer LSTM on q_star = [q, readout] (seq_len = 1) ----
        gates0 = (jnp.dot(q, wih0_q, preferred_element_type=jnp.float32)
                  + jnp.dot(readout, wih0_r, preferred_element_type=jnp.float32)
                  + jnp.dot(h0, whh0, preferred_element_type=jnp.float32)
                  + b0)
        h0, c0 = _gates_to_hc(gates0, c0)

        gates1 = (jnp.dot(h0, wih1, preferred_element_type=jnp.float32)
                  + jnp.dot(h1, whh1, preferred_element_type=jnp.float32)
                  + b1)
        h1, c1 = _gates_to_hc(gates1, c1)

        gates2 = (jnp.dot(h1, wih2, preferred_element_type=jnp.float32)
                  + jnp.dot(h2, whh2, preferred_element_type=jnp.float32)
                  + b2)
        h2, c2 = _gates_to_hc(gates2, c2)
        q = h2                                                   # (TB, H)

        # ---- attention over nodes: MXU contractions, single-query flash style ----
        feat = feat_ref[...]                                     # re-read from VMEM each iter
        # TODO(synk): if graphs are zero-padded to a common node count, mask pad
        # nodes (set their score to -inf) before the softmax.
        s = jnp.einsum('bqd,bnd->bqn', q[:, None, :], feat,
                       preferred_element_type=jnp.float32)       # (TB, 1, N)
        s = s - jnp.max(s, axis=-1, keepdims=True)
        p = jnp.exp(s)
        alpha = p / jnp.sum(p, axis=-1, keepdims=True)           # (TB, 1, N)
        readout = jnp.einsum('bqn,bnd->bqd', alpha, feat,
                             preferred_element_type=jnp.float32)[:, 0, :]  # (TB, H)

        return (h0, h1, h2, c0, c1, c2, q, readout)

    _, _, _, _, _, _, q, readout = lax.fori_loop(0, N_ITERS, body, carry0)

    # single lane-dense (TB, 128) store
    out_ref[...] = jnp.concatenate([q, readout], axis=-1)


def _full_spec(shape):
    nd = len(shape)
    return pl.BlockSpec(shape, lambda b, _nd=nd: (0,) * _nd)


def set2set_forward(feat, params, *, tb=None):
    B, N, D = feat.shape
    if tb is None:
        tb = B if B <= 128 else 128          # fill the MXU M-dim at realistic batch sizes
    assert B % tb == 0, "batch must be a multiple of the batch tile"

    feat_spec = pl.BlockSpec((tb, N, D), lambda b: (b, 0, 0))
    out_spec = pl.BlockSpec((tb, OUTPUT_DIM), lambda b: (b, 0))
    w_specs = [_full_spec(p.shape) for p in params]

    return pl.pallas_call(
        set2set_kernel,
        out_shape=jax.ShapeDtypeStruct((B, OUTPUT_DIM), jnp.float32),
        grid=(B // tb,),
        in_specs=[feat_spec] + w_specs,
        out_specs=out_spec,
        compiler_params=pltpu.CompilerParams(
            dimension_semantics=("parallel",)),
    )(feat, *params)


# ----------------------------- pure-JAX reference -----------------------------
def set2set_ref(feat, params):
    wih0, whh0, b0, wih1, whh1, b1, wih2, whh2, b2 = params
    wih = [wih0, wih1, wih2]
    whh = [whh0, whh1, whh2]
    bb = [b0, b1, b2]
    B = feat.shape[0]
    h = [jnp.zeros((B, HIDDEN), jnp.float32) for _ in range(N_LAYERS)]
    c = [jnp.zeros((B, HIDDEN), jnp.float32) for _ in range(N_LAYERS)]
    q_star = jnp.zeros((B, OUTPUT_DIM), jnp.float32)
    for _ in range(N_ITERS):
        x = q_star
        for l in range(N_LAYERS):
            gates = x @ wih[l] + h[l] @ whh[l] + bb[l]
            h[l], c[l] = _gates_to_hc(gates, c[l])
            x = h[l]
        q = h[-1]
        e = jnp.sum(feat * q[:, None, :], axis=-1)
        alpha = jax.nn.softmax(e, axis=1)
        readout = jnp.sum(feat * alpha[:, :, None], axis=1)
        q_star = jnp.concatenate([q, readout], axis=-1)
    return q_star


def _reorder_ifgo_to_ifog(w):
    """Permute PyTorch gate blocks (i, f, g, o) -> (i, f, o, g) along axis 0."""
    i, f, g, o = jnp.split(w, 4, axis=0)
    return jnp.concatenate([i, f, o, g], axis=0)


def init_params(key):
    """Deterministic PyTorch-style LSTM init: U(-1/sqrt(H), 1/sqrt(H)).

    Weights are pre-transposed to [in_dim, 4H] (row-major x @ W on the MXU),
    the two biases are pre-summed, and gate columns are reordered to (i,f,o,g).
    """
    k = 1.0 / float(jnp.sqrt(jnp.float32(HIDDEN)))
    params = []
    for layer in range(N_LAYERS):
        in_dim = OUTPUT_DIM if layer == 0 else HIDDEN
        key, k1, k2, k3, k4 = jax.random.split(key, 5)
        w_ih = jax.random.uniform(k1, (4 * HIDDEN, in_dim), jnp.float32, -k, k)
        w_hh = jax.random.uniform(k2, (4 * HIDDEN, HIDDEN), jnp.float32, -k, k)
        b_ih = jax.random.uniform(k3, (4 * HIDDEN,), jnp.float32, -k, k)
        b_hh = jax.random.uniform(k4, (4 * HIDDEN,), jnp.float32, -k, k)
        w_ih = _reorder_ifgo_to_ifog(w_ih)
        w_hh = _reorder_ifgo_to_ifog(w_hh)
        bias = _reorder_ifgo_to_ifog((b_ih + b_hh)[:, None])[:, 0]
        params += [w_ih.T, w_hh.T, bias.reshape(1, 4 * HIDDEN)]
    return tuple(params)


if __name__ == "__main__":
    key = jax.random.PRNGKey(0)
    k_feat, k_par = jax.random.split(key)

    batch_size = 2          # graph.batch_size
    nodes_per_graph = 8     # equal-size graphs in the dense batch
    feat = jax.random.normal(
        k_feat, (batch_size, nodes_per_graph, INPUT_DIM), jnp.float32)
    params = init_params(k_par)

    out = set2set_forward(feat, params)
    out = jax.block_until_ready(out)

    ref = set2set_ref(feat, params)
    assert out.shape == (batch_size, OUTPUT_DIM)
    assert jnp.allclose(out, ref, atol=1e-4, rtol=1e-4), (
        f"max err {jnp.max(jnp.abs(out - ref))}")
    print("KERNEL_OK")
</pallas_src>

<mosaic_0001>
module attributes {stable_mosaic.version = 11 : i64} {
  func.func @set2set_kernel(%arg0: i32, %arg1: memref<2x8x64xf32, #tpu.memory_space<vmem>>, %arg2: memref<128x256xf32, #tpu.memory_space<vmem>>, %arg3: memref<64x256xf32, #tpu.memory_space<vmem>>, %arg4: memref<1x256xf32, #tpu.memory_space<vmem>>, %arg5: memref<64x256xf32, #tpu.memory_space<vmem>>, %arg6: memref<64x256xf32, #tpu.memory_space<vmem>>, %arg7: memref<1x256xf32, #tpu.memory_space<vmem>>, %arg8: memref<64x256xf32, #tpu.memory_space<vmem>>, %arg9: memref<64x256xf32, #tpu.memory_space<vmem>>, %arg10: memref<1x256xf32, #tpu.memory_space<vmem>>, %arg11: memref<2x128xf32, #tpu.memory_space<vmem>>) attributes {dimension_semantics = [#tpu.dimension_semantics<parallel>], iteration_bounds = array<i64: 1>, scalar_prefetch = 0 : i64, scratch_operands = 0 : i64, tpu.core_type = #tpu.core_type<tc>, window_params = [{transform_indices = @transform_0, window_bounds = array<i64: 2, 8, 64>}, {pipeline_mode = #tpu.pipeline_mode<synchronous>, transform_indices = @transform_1, window_bounds = array<i64: 128, 256>}, {pipeline_mode = #tpu.pipeline_mode<synchronous>, transform_indices = @transform_2, window_bounds = array<i64: 64, 256>}, {pipeline_mode = #tpu.pipeline_mode<synchronous>, transform_indices = @transform_3, window_bounds = array<i64: 1, 256>}, {pipeline_mode = #tpu.pipeline_mode<synchronous>, transform_indices = @transform_4, window_bounds = array<i64: 64, 256>}, {pipeline_mode = #tpu.pipeline_mode<synchronous>, transform_indices = @transform_5, window_bounds = array<i64: 64, 256>}, {pipeline_mode = #tpu.pipeline_mode<synchronous>, transform_indices = @transform_6, window_bounds = array<i64: 1, 256>}, {pipeline_mode = #tpu.pipeline_mode<synchronous>, transform_indices = @transform_7, window_bounds = array<i64: 64, 256>}, {pipeline_mode = #tpu.pipeline_mode<synchronous>, transform_indices = @transform_8, window_bounds = array<i64: 64, 256>}, {pipeline_mode = #tpu.pipeline_mode<synchronous>, transform_indices = @transform_9, window_bounds = array<i64: 1, 256>}, {transform_indices = @transform_10, window_bounds = array<i64: 2, 128>}]} {
    %c0 = arith.constant 0 : index
    %c0_0 = arith.constant 0 : index
    %0 = vector.load %arg2[%c0, %c0_0] : memref<128x256xf32, #tpu.memory_space<vmem>>, vector<128x256xf32>
    %1 = vector.extract_strided_slice %0 {offsets = [0, 0], sizes = [64, 256], strides = [1, 1]} : vector<128x256xf32> to vector<64x256xf32>
    %2 = vector.extract_strided_slice %0 {offsets = [64, 0], sizes = [64, 256], strides = [1, 1]} : vector<128x256xf32> to vector<64x256xf32>
    %c0_1 = arith.constant 0 : index
    %c0_2 = arith.constant 0 : index
    %3 = vector.load %arg3[%c0_1, %c0_2] : memref<64x256xf32, #tpu.memory_space<vmem>>, vector<64x256xf32>
    %c0_3 = arith.constant 0 : index
    %c0_4 = arith.constant 0 : index
    %4 = vector.load %arg4[%c0_3, %c0_4] : memref<1x256xf32, #tpu.memory_space<vmem>>, vector<1x256xf32>
    %c0_5 = arith.constant 0 : index
    %c0_6 = arith.constant 0 : index
    %5 = vector.load %arg5[%c0_5, %c0_6] : memref<64x256xf32, #tpu.memory_space<vmem>>, vector<64x256xf32>
    %c0_7 = arith.constant 0 : index
    %c0_8 = arith.constant 0 : index
    %6 = vector.load %arg6[%c0_7, %c0_8] : memref<64x256xf32, #tpu.memory_space<vmem>>, vector<64x256xf32>
    %c0_9 = arith.constant 0 : index
    %c0_10 = arith.constant 0 : index
    %7 = vector.load %arg7[%c0_9, %c0_10] : memref<1x256xf32, #tpu.memory_space<vmem>>, vector<1x256xf32>
    %c0_11 = arith.constant 0 : index
    %c0_12 = arith.constant 0 : index
    %8 = vector.load %arg8[%c0_11, %c0_12] : memref<64x256xf32, #tpu.memory_space<vmem>>, vector<64x256xf32>
    %c0_13 = arith.constant 0 : index
    %c0_14 = arith.constant 0 : index
    %9 = vector.load %arg9[%c0_13, %c0_14] : memref<64x256xf32, #tpu.memory_space<vmem>>, vector<64x256xf32>
    %c0_15 = arith.constant 0 : index
    %c0_16 = arith.constant 0 : index
    %10 = vector.load %arg10[%c0_15, %c0_16] : memref<1x256xf32, #tpu.memory_space<vmem>>, vector<1x256xf32>
    %cst = arith.constant 0.000000e+00 : f32
    %11 = vector.broadcast %cst : f32 to vector<2x64xf32>
    %c0_i32 = arith.constant 0 : i32
    %c6_i32 = arith.constant 6 : i32
    %12 = arith.addi %c0_i32, %c6_i32 : i32
    %c1_i32 = arith.constant 1 : i32
    %13:8 = scf.for %arg12 = %c0_i32 to %12 step %c1_i32 iter_args(%arg13 = %11, %arg14 = %11, %arg15 = %11, %arg16 = %11, %arg17 = %11, %arg18 = %11, %arg19 = %11, %arg20 = %11) -> (vector<2x64xf32>, vector<2x64xf32>, vector<2x64xf32>, vector<2x64xf32>, vector<2x64xf32>, vector<2x64xf32>, vector<2x64xf32>, vector<2x64xf32>)  : i32 {
      %cst_19 = arith.constant dense<0.000000e+00> : vector<2x256xf32>
      %16 = tpu.matmul %arg19, %1, %cst_19 {dimension_numbers = #tpu.dot_dimension_numbers<[1], [0], [0], [1], [0, 0, 1, 1], [], []>} : vector<2x64xf32>, vector<64x256xf32>, vector<2x256xf32> -> vector<2x256xf32>
      %cst_20 = arith.constant dense<0.000000e+00> : vector<2x256xf32>
      %17 = tpu.matmul %arg20, %2, %cst_20 {dimension_numbers = #tpu.dot_dimension_numbers<[1], [0], [0], [1], [0, 0, 1, 1], [], []>} : vector<2x64xf32>, vector<64x256xf32>, vector<2x256xf32> -> vector<2x256xf32>
      %18 = arith.addf %16, %17 : vector<2x256xf32>
      %cst_21 = arith.constant dense<0.000000e+00> : vector<2x256xf32>
      %19 = tpu.matmul %arg13, %3, %cst_21 {dimension_numbers = #tpu.dot_dimension_numbers<[1], [0], [0], [1], [0, 0, 1, 1], [], []>} : vector<2x64xf32>, vector<64x256xf32>, vector<2x256xf32> -> vector<2x256xf32>
      %20 = arith.addf %18, %19 : vector<2x256xf32>
      %21 = vector.broadcast %4 : vector<1x256xf32> to vector<2x256xf32>
      %22 = arith.addf %20, %21 : vector<2x256xf32>
      %23 = vector.extract_strided_slice %22 {offsets = [0, 0], sizes = [2, 192], strides = [1, 1]} : vector<2x256xf32> to vector<2x192xf32>
      %24 = arith.negf %23 : vector<2x192xf32>
      %25 = math.exp %24 : vector<2x192xf32>
      %cst_22 = arith.constant 1.000000e+00 : f32
      %26 = vector.broadcast %cst_22 : f32 to vector<2x192xf32>
      %27 = arith.addf %26, %25 : vector<2x192xf32>
      %28 = arith.divf %26, %27 : vector<2x192xf32>
      %29 = vector.extract_strided_slice %28 {offsets = [0, 0], sizes = [2, 64], strides = [1, 1]} : vector<2x192xf32> to vector<2x64xf32>
      %30 = vector.extract_strided_slice %28 {offsets = [0, 64], sizes = [2, 64], strides = [1, 1]} : vector<2x192xf32> to vector<2x64xf32>
      %31 = vector.extract_strided_slice %28 {offsets = [0, 128], sizes = [2, 64], strides = [1, 1]} : vector<2x192xf32> to vector<2x64xf32>
      %32 = vector.extract_strided_slice %22 {offsets = [0, 192], sizes = [2, 64], strides = [1, 1]} : vector<2x256xf32> to vector<2x64xf32>
      %33 = math.tanh %32 : vector<2x64xf32>
      %34 = arith.mulf %30, %arg16 : vector<2x64xf32>
      %35 = arith.mulf %29, %33 : vector<2x64xf32>
      %36 = arith.addf %34, %35 : vector<2x64xf32>
      %37 = math.tanh %36 : vector<2x64xf32>
      %38 = arith.mulf %31, %37 : vector<2x64xf32>
      %cst_23 = arith.constant dense<0.000000e+00> : vector<2x256xf32>
      %39 = tpu.matmul %38, %5, %cst_23 {dimension_numbers = #tpu.dot_dimension_numbers<[1], [0], [0], [1], [0, 0, 1, 1], [], []>} : vector<2x64xf32>, vector<64x256xf32>, vector<2x256xf32> -> vector<2x256xf32>
      %cst_24 = arith.constant dense<0.000000e+00> : vector<2x256xf32>
      %40 = tpu.matmul %arg14, %6, %cst_24 {dimension_numbers = #tpu.dot_dimension_numbers<[1], [0], [0], [1], [0, 0, 1, 1], [], []>} : vector<2x64xf32>, vector<64x256xf32>, vector<2x256xf32> -> vector<2x256xf32>
      %41 = arith.addf %39, %40 : vector<2x256xf32>
      %42 = vector.broadcast %7 : vector<1x256xf32> to vector<2x256xf32>
      %43 = arith.addf %41, %42 : vector<2x256xf32>
      %44 = vector.extract_strided_slice %43 {offsets = [0, 0], sizes = [2, 192], strides = [1, 1]} : vector<2x256xf32> to vector<2x192xf32>
      %45 = arith.negf %44 : vector<2x192xf32>
      %46 = math.exp %45 : vector<2x192xf32>
      %cst_25 = arith.constant 1.000000e+00 : f32
      %47 = vector.broadcast %cst_25 : f32 to vector<2x192xf32>
      %48 = arith.addf %47, %46 : vector<2x192xf32>
      %49 = arith.divf %47, %48 : vector<2x192xf32>
      %50 = vector.extract_strided_slice %49 {offsets = [0, 0], sizes = [2, 64], strides = [1, 1]} : vector<2x192xf32> to vector<2x64xf32>
      %51 = vector.extract_strided_slice %49 {offsets = [0, 64], sizes = [2, 64], strides = [1, 1]} : vector<2x192xf32> to vector<2x64xf32>
      %52 = vector.extract_strided_slice %49 {offsets = [0, 128], sizes = [2, 64], strides = [1, 1]} : vector<2x192xf32> to vector<2x64xf32>
      %53 = vector.extract_strided_slice %43 {offsets = [0, 192], sizes = [2, 64], strides = [1, 1]} : vector<2x256xf32> to vector<2x64xf32>
      %54 = math.tanh %53 : vector<2x64xf32>
      %55 = arith.mulf %51, %arg17 : vector<2x64xf32>
      %56 = arith.mulf %50, %54 : vector<2x64xf32>
      %57 = arith.addf %55, %56 : vector<2x64xf32>
      %58 = math.tanh %57 : vector<2x64xf32>
      %59 = arith.mulf %52, %58 : vector<2x64xf32>
      %cst_26 = arith.constant dense<0.000000e+00> : vector<2x256xf32>
      %60 = tpu.matmul %59, %8, %cst_26 {dimension_numbers = #tpu.dot_dimension_numbers<[1], [0], [0], [1], [0, 0, 1, 1], [], []>} : vector<2x64xf32>, vector<64x256xf32>, vector<2x256xf32> -> vector<2x256xf32>
      %cst_27 = arith.constant dense<0.000000e+00> : vector<2x256xf32>
      %61 = tpu.matmul %arg15, %9, %cst_27 {dimension_numbers = #tpu.dot_dimension_numbers<[1], [0], [0], [1], [0, 0, 1, 1], [], []>} : vector<2x64xf32>, vector<64x256xf32>, vector<2x256xf32> -> vector<2x256xf32>
      %62 = arith.addf %60, %61 : vector<2x256xf32>
      %63 = vector.broadcast %10 : vector<1x256xf32> to vector<2x256xf32>
      %64 = arith.addf %62, %63 : vector<2x256xf32>
      %65 = vector.extract_strided_slice %64 {offsets = [0, 0], sizes = [2, 192], strides = [1, 1]} : vector<2x256xf32> to vector<2x192xf32>
      %66 = arith.negf %65 : vector<2x192xf32>
      %67 = math.exp %66 : vector<2x192xf32>
      %cst_28 = arith.constant 1.000000e+00 : f32
      %68 = vector.broadcast %cst_28 : f32 to vector<2x192xf32>
      %69 = arith.addf %68, %67 : vector<2x192xf32>
      %70 = arith.divf %68, %69 : vector<2x192xf32>
      %71 = vector.extract_strided_slice %70 {offsets = [0, 0], sizes = [2, 64], strides = [1, 1]} : vector<2x192xf32> to vector<2x64xf32>
      %72 = vector.extract_strided_slice %70 {offsets = [0, 64], sizes = [2, 64], strides = [1, 1]} : vector<2x192xf32> to vector<2x64xf32>
      %73 = vector.extract_strided_slice %70 {offsets = [0, 128], sizes = [2, 64], strides = [1, 1]} : vector<2x192xf32> to vector<2x64xf32>
      %74 = vector.extract_strided_slice %64 {offsets = [0, 192], sizes = [2, 64], strides = [1, 1]} : vector<2x256xf32> to vector<2x64xf32>
      %75 = math.tanh %74 : vector<2x64xf32>
      %76 = arith.mulf %72, %arg18 : vector<2x64xf32>
      %77 = arith.mulf %71, %75 : vector<2x64xf32>
      %78 = arith.addf %76, %77 : vector<2x64xf32>
      %79 = math.tanh %78 : vector<2x64xf32>
      %80 = arith.mulf %73, %79 : vector<2x64xf32>
      %c0_29 = arith.constant 0 : index
      %c0_30 = arith.constant 0 : index
      %c0_31 = arith.constant 0 : index
      %81 = vector.load %arg1[%c0_29, %c0_30, %c0_31] : memref<2x8x64xf32, #tpu.memory_space<vmem>>, vector<2x8x64xf32>
      %82 = vector.shape_cast %80 : vector<2x64xf32> to vector<2x1x64xf32>
      "tpu.trace_start"() <{level = 10 : i32, message = "bqd,bnd->bqn"}> : () -> ()
      %cst_32 = arith.constant dense<0.000000e+00> : vector<2x1x8xf32>
      %83 = tpu.matmul %82, %81, %cst_32 {dimension_numbers = #tpu.dot_dimension_numbers<[2], [2], [1], [1], [0, 0, 0, 1, 1, 1], [0], [0]>} : vector<2x1x64xf32>, vector<2x8x64xf32>, vector<2x1x8xf32> -> vector<2x1x8xf32>
      "tpu.trace_stop"() : () -> ()
      %cst_33 = arith.constant dense<0xFF800000> : vector<2x1xf32>
      %84 = vector.multi_reduction <maximumf>, %83, %cst_33 [2] : vector<2x1x8xf32> to vector<2x1xf32>
      %85 = vector.shape_cast %84 : vector<2x1xf32> to vector<2x1x1xf32>
      %86 = vector.broadcast %85 : vector<2x1x1xf32> to vector<2x1x8xf32>
      %87 = arith.subf %83, %86 : vector<2x1x8xf32>
      %88 = math.exp %87 : vector<2x1x8xf32>
      %cst_34 = arith.constant dense<0.000000e+00> : vector<2x1xf32>
      %89 = vector.multi_reduction <add>, %88, %cst_34 [2] : vector<2x1x8xf32> to vector<2x1xf32>
      %90 = vector.shape_cast %89 : vector<2x1xf32> to vector<2x1x1xf32>
      %91 = vector.broadcast %90 : vector<2x1x1xf32> to vector<2x1x8xf32>
      %92 = arith.divf %88, %91 : vector<2x1x8xf32>
      "tpu.trace_start"() <{level = 10 : i32, message = "bqn,bnd->bqd"}> : () -> ()
      %cst_35 = arith.constant dense<0.000000e+00> : vector<2x1x64xf32>
      %93 = tpu.matmul %92, %81, %cst_35 {dimension_numbers = #tpu.dot_dimension_numbers<[2], [1], [1], [2], [0, 0, 0, 1, 1, 2], [0], [0]>} : vector<2x1x8xf32>, vector<2x8x64xf32>, vector<2x1x64xf32> -> vector<2x1x64xf32>
      "tpu.trace_stop"() : () -> ()
      %94 = vector.shape_cast %93 : vector<2x1x64xf32> to vector<2x64xf32>
      scf.yield %38, %59, %80, %36, %57, %78, %80, %94 : vector<2x64xf32>, vector<2x64xf32>, vector<2x64xf32>, vector<2x64xf32>, vector<2x64xf32>, vector<2x64xf32>, vector<2x64xf32>, vector<2x64xf32>
    }
    %14 = tpu.concatenate %13#6, %13#7 in 1 : vector<2x64xf32>, vector<2x64xf32> -> vector<2x128xf32>
    %c0_17 = arith.constant 0 : index
    %c0_18 = arith.constant 0 : index
    %15 = vector.load %arg11[%c0_17, %c0_18] : memref<2x128xf32, #tpu.memory_space<vmem>>, vector<2x128xf32>
    tpu.vector_store %arg11[%c0_17, %c0_18], %14 {strides = array<i32>} : memref<2x128xf32, #tpu.memory_space<vmem>>, vector<2x128xf32>,
    return
  }
  func.func @transform_0(%arg0: i32) -> (i32, i32, i32) {
    %c0_i32 = arith.constant 0 : i32
    %c0_i32_0 = arith.constant 0 : i32
    %c0_i32_1 = arith.constant 0 : i32
    return %arg0, %c0_i32, %c0_i32_0 : i32, i32, i32
  }
  func.func @transform_1(%arg0: i32) -> (i32, i32) {
    %c0_i32 = arith.constant 0 : i32
    %c0_i32_0 = arith.constant 0 : i32
    %c0_i32_1 = arith.constant 0 : i32
    return %c0_i32, %c0_i32_0 : i32, i32
  }
  func.func @transform_2(%arg0: i32) -> (i32, i32) {
    %c0_i32 = arith.constant 0 : i32
    %c0_i32_0 = arith.constant 0 : i32
    %c0_i32_1 = arith.constant 0 : i32
    return %c0_i32, %c0_i32_0 : i32, i32
  }
  func.func @transform_3(%arg0: i32) -> (i32, i32) {
    %c0_i32 = arith.constant 0 : i32
    %c0_i32_0 = arith.constant 0 : i32
    %c0_i32_1 = arith.constant 0 : i32
    return %c0_i32, %c0_i32_0 : i32, i32
  }
  func.func @transform_4(%arg0: i32) -> (i32, i32) {
    %c0_i32 = arith.constant 0 : i32
    %c0_i32_0 = arith.constant 0 : i32
    %c0_i32_1 = arith.constant 0 : i32
    return %c0_i32, %c0_i32_0 : i32, i32
  }
  func.func @transform_5(%arg0: i32) -> (i32, i32) {
    %c0_i32 = arith.constant 0 : i32
    %c0_i32_0 = arith.constant 0 : i32
    %c0_i32_1 = arith.constant 0 : i32
    return %c0_i32, %c0_i32_0 : i32, i32
  }
  func.func @transform_6(%arg0: i32) -> (i32, i32) {
    %c0_i32 = arith.constant 0 : i32
    %c0_i32_0 = arith.constant 0 : i32
    %c0_i32_1 = arith.constant 0 : i32
    return %c0_i32, %c0_i32_0 : i32, i32
  }
  func.func @transform_7(%arg0: i32) -> (i32, i32) {
    %c0_i32 = arith.constant 0 : i32
    %c0_i32_0 = arith.constant 0 : i32
    %c0_i32_1 = arith.constant 0 : i32
    return %c0_i32, %c0_i32_0 : i32, i32
  }
  func.func @transform_8(%arg0: i32) -> (i32, i32) {
    %c0_i32 = arith.constant 0 : i32
    %c0_i32_0 = arith.constant 0 : i32
    %c0_i32_1 = arith.constant 0 : i32
    return %c0_i32, %c0_i32_0 : i32, i32
  }
  func.func @transform_9(%arg0: i32) -> (i32, i32) {
    %c0_i32 = arith.constant 0 : i32
    %c0_i32_0 = arith.constant 0 : i32
    %c0_i32_1 = arith.constant 0 : i32
    return %c0_i32, %c0_i32_0 : i32, i32
  }
  func.func @transform_10(%arg0: i32) -> (i32, i32) {
    %c0_i32 = arith.constant 0 : i32
    %c0_i32_0 = arith.constant 0 : i32
    return %arg0, %c0_i32 : i32, i32
  }
}

</mosaic_0001>

<llo_original>
// kernel: tpu_custom_call.1
$region0: #{tpu_custom_call.1}
  #allocation0 [shape = 'u32[]', space=smem, size = 0x4, offset = 0x4, fixed_abs, tag = 'smem constant byte address 0x4 - core index']
  #allocation1 [shape = 'u32[72,128]{1,0:T(1,128)}', space=vmem, size = 0x9000, scoped, tag = 'internal scratch']
  %s0 = inlined_call_operand.hbm [shape: f32[2,8,64], index: 0, kind: input, shape index: {}]
  %s1 = inlined_call_operand.hbm [shape: f32[128,256], index: 1, kind: input, shape index: {}]
  %s2 = inlined_call_operand.hbm [shape: f32[64,256], index: 2, kind: input, shape index: {}]
  %s3 = inlined_call_operand.vmem [shape: f32[1,256], index: 3, kind: input, shape index: {}]
  %s4 = inlined_call_operand.hbm [shape: f32[64,256], index: 4, kind: input, shape index: {}]
  %s5 = inlined_call_operand.hbm [shape: f32[64,256], index: 5, kind: input, shape index: {}]
  %s6 = inlined_call_operand.vmem [shape: f32[1,256], index: 6, kind: input, shape index: {}]
  %s7 = inlined_call_operand.hbm [shape: f32[64,256], index: 7, kind: input, shape index: {}]
  %s8 = inlined_call_operand.hbm [shape: f32[64,256], index: 8, kind: input, shape index: {}]
  %s9 = inlined_call_operand.vmem [shape: f32[1,256], index: 9, kind: input, shape index: {}]
  %s10 = inlined_call_operand.hbm [shape: f32[2,128], index: 10, kind: output, shape index: {}]
  %s11 = sld [smem:[#allocation0]]
  $region85: #{tpu_custom_call.1} parent=0
    _
  %s13 = ssub.s32 1, %s11
  %s14 = scalar_select 0, %s13, %s11
  $region1: #{tpu_custom_call.1} parent=0
    #allocation2 [shape = 'u8[8192]{0}', space=vmem, size = 0x2000, scoped, tag = 'input window, operand 0, single buffered']
    #allocation3 [shape = 's32[1]{0}', space=sflag, size = 0x4, scoped, tag = 'scoped memory for tpu_custom_call.1']
    #allocation4 [shape = 's32[1]{0}', space=sflag, size = 0x4, scoped, tag = 'scoped memory for tpu_custom_call.1']
    #allocation5 [shape = 'u8[131072]{0}', space=vmem, size = 0x20000, scoped, tag = 'input window, operand 1, single buffered']
    #allocation6 [shape = 's32[1]{0}', space=sflag, size = 0x4, scoped, tag = 'scoped memory for tpu_custom_call.1']
    #allocation7 [shape = 'u8[65536]{0}', space=vmem, size = 0x10000, scoped, tag = 'input window, operand 2, single buffered']
    #allocation8 [shape = 'u8[65536]{0}', space=vmem, size = 0x10000, scoped, tag = 'input window, operand 4, single buffered']
    #allocation9 [shape = 's32[1]{0}', space=sflag, size = 0x4, scoped, tag = 'scoped memory for tpu_custom_call.1']
    #allocation10 [shape = 'u8[65536]{0}', space=vmem, size = 0x10000, scoped, tag = 'input window, operand 5, single buffered']
    #allocation11 [shape = 'u8[65536]{0}', space=vmem, size = 0x10000, scoped, tag = 'input window, operand 7, single buffered']
    #allocation12 [shape = 's32[1]{0}', space=sflag, size = 0x4, scoped, tag = 'scoped memory for tpu_custom_call.1']
    #allocation13 [shape = 'u8[65536]{0}', space=vmem, size = 0x10000, scoped, tag = 'input window, operand 8, single buffered']
    #allocation14 [shape = 'u8[1024]{0}', space=vmem, size = 0x400, scoped, tag = 'output window, operand 0, single buffered']
    %15 = vsyncpa [#allocation3], 0
    %16 = vsyncpa [#allocation6], 0
    %17 = vsyncpa [#allocation9], 0
    %18 = vsyncpa [#allocation12], 0
    %19 = vsyncpa [#allocation4], 0
    // Predicated region
    $region2: #{tpu_custom_call.1} parent=1 // pred_check
      _
    $region3: #{tpu_custom_call.1} parent=1 // pred_check_branch
      %21 = sbr.rel (0) target = $region5
    $region4: #{tpu_custom_call.1} parent=1 // pred_region
      %23 = vsyncadd [#allocation3], 0
      %s24 = sshll.u32 %s0, 4
      %s25 = int_to_ptr.hbm [resolvable:$true] %s24
      %s26 = sshll.u32 [#allocation2], 4
      %s27 = int_to_ptr.vmem [resolvable:$true] %s26
      %32 = dma.hbm_to_vmem [thread:$0]  %s25, 256, %s27, [#allocation3], 128, 128, 8
    $region5: #{tpu_custom_call.1} parent=1 // pred_fallthru
      _
    // Predicated region
    $region6: #{tpu_custom_call.1} parent=1 // pred_check
      _
    $region7: #{tpu_custom_call.1} parent=1 // pred_check_branch
      %34 = sbr.rel (0) target = $region9
    $region8: #{tpu_custom_call.1} parent=1 // pred_region
      %36 = vsyncadd [#allocation6], 0
      %s37 = sshll.u32 %s1, 4
      %s38 = int_to_ptr.hbm [resolvable:$true] %s37
      %s39 = sshll.u32 [#allocation5], 4
      %s40 = int_to_ptr.vmem [resolvable:$true] %s39
      %45 = dma.hbm_to_vmem [thread:$0]  %s38, 4096, %s40, [#allocation6], 256, 256, 16
    $region9: #{tpu_custom_call.1} parent=1 // pred_fallthru
      _
    // Predicated region
    $region10: #{tpu_custom_call.1} parent=1 // pred_check
      _
    $region11: #{tpu_custom_call.1} parent=1 // pred_check_branch
      %47 = sbr.rel (0) target = $region13
    $region12: #{tpu_custom_call.1} parent=1 // pred_region
      %49 = vsyncadd [#allocation6], 0
      %s50 = sshll.u32 %s2, 4
      %s51 = int_to_ptr.hbm [resolvable:$true] %s50
      %s52 = sshll.u32 [#allocation7], 4
      %s53 = int_to_ptr.vmem [resolvable:$true] %s52
      %58 = dma.hbm_to_vmem [thread:$0]  %s51, 2048, %s53, [#allocation6], 256, 256, 16
    $region13: #{tpu_custom_call.1} parent=1 // pred_fallthru
      _
    // Predicated region
    $region14: #{tpu_custom_call.1} parent=1 // pred_check
      _
    $region15: #{tpu_custom_call.1} parent=1 // pred_check_branch
      %60 = sbr.rel (0) target = $region17
    $region16: #{tpu_custom_call.1} parent=1 // pred_region
      _
    $region17: #{tpu_custom_call.1} parent=1 // pred_fallthru
      _
    // Predicated region
    $region18: #{tpu_custom_call.1} parent=1 // pred_check
      _
    $region19: #{tpu_custom_call.1} parent=1 // pred_check_branch
      %62 = sbr.rel (0) target = $region21
    $region20: #{tpu_custom_call.1} parent=1 // pred_region
      %64 = vsyncadd [#allocation9], 0
      %s65 = sshll.u32 %s4, 4
      %s66 = int_to_ptr.hbm [resolvable:$true] %s65
      %s67 = sshll.u32 [#allocation8], 4
      %s68 = int_to_ptr.vmem [resolvable:$true] %s67
      %73 = dma.hbm_to_vmem [thread:$0]  %s66, 2048, %s68, [#allocation9], 256, 256, 16
    $region21: #{tpu_custom_call.1} parent=1 // pred_fallthru
      _
    // Predicated region
    $region22: #{tpu_custom_call.1} parent=1 // pred_check
      _
    $region23: #{tpu_custom_call.1} parent=1 // pred_check_branch
      %75 = sbr.rel (0) target = $region25
    $region24: #{tpu_custom_call.1} parent=1 // pred_region
      %77 = vsyncadd [#allocation9], 0
      %s78 = sshll.u32 %s5, 4
      %s79 = int_to_ptr.hbm [resolvable:$true] %s78
      %s80 = sshll.u32 [#allocation10], 4
      %s81 = int_to_ptr.vmem [resolvable:$true] %s80
      %86 = dma.hbm_to_vmem [thread:$0]  %s79, 2048, %s81, [#allocation9], 256, 256, 16
    $region25: #{tpu_custom_call.1} parent=1 // pred_fallthru
      _
    // Predicated region
    $region26: #{tpu_custom_call.1} parent=1 // pred_check
      _
    $region27: #{tpu_custom_call.1} parent=1 // pred_check_branch
      %88 = sbr.rel (0) target = $region29
    $region28: #{tpu_custom_call.1} parent=1 // pred_region
      _
    $region29: #{tpu_custom_call.1} parent=1 // pred_fallthru
      _
    // Predicated region
    $region30: #{tpu_custom_call.1} parent=1 // pred_check
      _
    $region31: #{tpu_custom_call.1} parent=1 // pred_check_branch
      %90 = sbr.rel (0) target = $region33
    $region32: #{tpu_custom_call.1} parent=1 // pred_region
      %92 = vsyncadd [#allocation12], 0
      %s93 = sshll.u32 %s7, 4
      %s94 = int_to_ptr.hbm [resolvable:$true] %s93
      %s95 = sshll.u32 [#allocation11], 4
      %s96 = int_to_ptr.vmem [resolvable:$true] %s95
      %101 = dma.hbm_to_vmem [thread:$0]  %s94, 2048, %s96, [#allocation12], 256, 256, 16
    $region33: #{tpu_custom_call.1} parent=1 // pred_fallthru
      _
    // Predicated region
    $region34: #{tpu_custom_call.1} parent=1 // pred_check
      _
    $region35: #{tpu_custom_call.1} parent=1 // pred_check_branch
      %103 = sbr.rel (0) target = $region37
    $region36: #{tpu_custom_call.1} parent=1 // pred_region
      %105 = vsyncadd [#allocation12], 0
      %s106 = sshll.u32 %s8, 4
      %s107 = int_to_ptr.hbm [resolvable:$true] %s106
      %s108 = sshll.u32 [#allocation13], 4
      %s109 = int_to_ptr.vmem [resolvable:$true] %s108
      %114 = dma.hbm_to_vmem [thread:$0]  %s107, 2048, %s109, [#allocation12], 256, 256, 16
    $region37: #{tpu_custom_call.1} parent=1 // pred_fallthru
      _
    // Predicated region
    $region38: #{tpu_custom_call.1} parent=1 // pred_check
      _
    $region39: #{tpu_custom_call.1} parent=1 // pred_check_branch
      %116 = sbr.rel (0) target = $region41
    $region40: #{tpu_custom_call.1} parent=1 // pred_region
      _
    $region41: #{tpu_custom_call.1} parent=1 // pred_fallthru
      _
    // Predicated region
    $region42: #{tpu_custom_call.1} parent=1 // pred_check
      _
    $region43: #{tpu_custom_call.1} parent=1 // pred_check_branch
      %118 = sbr.rel (0) target = $region45
    $region44: #{tpu_custom_call.1} parent=1 // pred_region
      %120 = dma.done [#allocation3], 256
    $region45: #{tpu_custom_call.1} parent=1 // pred_fallthru
      _
    // Predicated region
    $region46: #{tpu_custom_call.1} parent=1 // pred_check
      _
    $region47: #{tpu_custom_call.1} parent=1 // pred_check_branch
      %122 = sbr.rel (0) target = $region49
    $region48: #{tpu_custom_call.1} parent=1 // pred_region
      %124 = dma.done [#allocation6], 4096
    $region49: #{tpu_custom_call.1} parent=1 // pred_fallthru
      _
    // Predicated region
    $region50: #{tpu_custom_call.1} parent=1 // pred_check
      _
    $region51: #{tpu_custom_call.1} parent=1 // pred_check_branch
      %126 = sbr.rel (0) target = $region53
    $region52: #{tpu_custom_call.1} parent=1 // pred_region
      %128 = dma.done [#allocation6], 2048
    $region53: #{tpu_custom_call.1} parent=1 // pred_fallthru
      _
    // Predicated region
    $region54: #{tpu_custom_call.1} parent=1 // pred_check
      _
    $region55: #{tpu_custom_call.1} parent=1 // pred_check_branch
      %130 = sbr.rel (0) target = $region57
    $region56: #{tpu_custom_call.1} parent=1 // pred_region
      %132 = dma.done [#allocation9], 2048
    $region57: #{tpu_custom_call.1} parent=1 // pred_fallthru
      _
    // Predicated region
    $region58: #{tpu_custom_call.1} parent=1 // pred_check
      _
    $region59: #{tpu_custom_call.1} parent=1 // pred_check_branch
      %134 = sbr.rel (0) target = $region61
    $region60: #{tpu_custom_call.1} parent=1 // pred_region
      %136 = dma.done [#allocation9], 2048
    $region61: #{tpu_custom_call.1} parent=1 // pred_fallthru
      _
    // Predicated region
    $region62: #{tpu_custom_call.1} parent=1 // pred_check
      _
    $region63: #{tpu_custom_call.1} parent=1 // pred_check_branch
      %138 = sbr.rel (0) target = $region65
    $region64: #{tpu_custom_call.1} parent=1 // pred_region
      %140 = dma.done [#allocation12], 2048
    $region65: #{tpu_custom_call.1} parent=1 // pred_fallthru
      _
    // Predicated region
    $region66: #{tpu_custom_call.1} parent=1 // pred_check
      _
    $region67: #{tpu_custom_call.1} parent=1 // pred_check_branch
      %142 = sbr.rel (0) target = $region69
    $region68: #{tpu_custom_call.1} parent=1 // pred_region
      %144 = dma.done [#allocation12], 2048
    $region69: #{tpu_custom_call.1} parent=1 // pred_fallthru
      _
    %v145 = vld [vmem:[#allocation5] sm:$0xff]
    %v146 = vld [vmem:[#allocation5 + $0x8] sm:$0xff]
    %v147 = vld [vmem:[#allocation5 + $0x10] sm:$0xff]
    %v148 = vld [vmem:[#allocation5 + $0x18] sm:$0xff]
    %v149 = vld [vmem:[#allocation5 + $0x20] sm:$0xff]
    %v150 = vld [vmem:[#allocation5 + $0x28] sm:$0xff]
    %v151 = vld [vmem:[#allocation5 + $0x30] sm:$0xff]
    %v152 = vld [vmem:[#allocation5 + $0x38] sm:$0xff]
    %v153 = vld [vmem:[#allocation5 + $0x40] sm:$0xff]
    %v154 = vld [vmem:[#allocation5 + $0x48] sm:$0xff]
    %v155 = vld [vmem:[#allocation5 + $0x50] sm:$0xff]
    %v156 = vld [vmem:[#allocation5 + $0x58] sm:$0xff]
    %v157 = vld [vmem:[#allocation5 + $0x60] sm:$0xff]
    %v158 = vld [vmem:[#allocation5 + $0x68] sm:$0xff]
    %v159 = vld [vmem:[#allocation5 + $0x70] sm:$0xff]
    %v160 = vld [vmem:[#allocation5 + $0x78] sm:$0xff]
    %v161 = vld [vmem:[#allocation5 + $0x80] sm:$0xff]
    %v162 = vld [vmem:[#allocation5 + $0x88] sm:$0xff]
    %v163 = vld [vmem:[#allocation5 + $0x90] sm:$0xff]
    %v164 = vld [vmem:[#allocation5 + $0x98] sm:$0xff]
    %v165 = vld [vmem:[#allocation5 + $0xa0] sm:$0xff]
    %v166 = vld [vmem:[#allocation5 + $0xa8] sm:$0xff]
    %v167 = vld [vmem:[#allocation5 + $0xb0] sm:$0xff]
    %v168 = vld [vmem:[#allocation5 + $0xb8] sm:$0xff]
    %v169 = vld [vmem:[#allocation5 + $0xc0] sm:$0xff]
    %v170 = vld [vmem:[#allocation5 + $0xc8] sm:$0xff]
    %v171 = vld [vmem:[#allocation5 + $0xd0] sm:$0xff]
    %v172 = vld [vmem:[#allocation5 + $0xd8] sm:$0xff]
    %v173 = vld [vmem:[#allocation5 + $0xe0] sm:$0xff]
    %v174 = vld [vmem:[#allocation5 + $0xe8] sm:$0xff]
    %v175 = vld [vmem:[#allocation5 + $0xf0] sm:$0xff]
    %v176 = vld [vmem:[#allocation5 + $0xf8] sm:$0xff]
    %v177 = vld [vmem:[#allocation7] sm:$0xff]
    %v178 = vld [vmem:[#allocation7 + $0x8] sm:$0xff]
    %v179 = vld [vmem:[#allocation7 + $0x10] sm:$0xff]
    %v180 = vld [vmem:[#allocation7 + $0x18] sm:$0xff]
    %v181 = vld [vmem:[#allocation7 + $0x20] sm:$0xff]
    %v182 = vld [vmem:[#allocation7 + $0x28] sm:$0xff]
    %v183 = vld [vmem:[#allocation7 + $0x30] sm:$0xff]
    %v184 = vld [vmem:[#allocation7 + $0x38] sm:$0xff]
    %v185 = vld [vmem:[#allocation7 + $0x40] sm:$0xff]
    %v186 = vld [vmem:[#allocation7 + $0x48] sm:$0xff]
    %v187 = vld [vmem:[#allocation7 + $0x50] sm:$0xff]
    %v188 = vld [vmem:[#allocation7 + $0x58] sm:$0xff]
    %v189 = vld [vmem:[#allocation7 + $0x60] sm:$0xff]
    %v190 = vld [vmem:[#allocation7 + $0x68] sm:$0xff]
    %v191 = vld [vmem:[#allocation7 + $0x70] sm:$0xff]
    %v192 = vld [vmem:[#allocation7 + $0x78] sm:$0xff]
    %v193 = vld [vmem:[%s3] sm:$0x3]
    %v194 = vld [vmem:[#allocation8] sm:$0xff]
    %v195 = vld [vmem:[#allocation8 + $0x8] sm:$0xff]
    %v196 = vld [vmem:[#allocation8 + $0x10] sm:$0xff]
    %v197 = vld [vmem:[#allocation8 + $0x18] sm:$0xff]
    %v198 = vld [vmem:[#allocation8 + $0x20] sm:$0xff]
    %v199 = vld [vmem:[#allocation8 + $0x28] sm:$0xff]
    %v200 = vld [vmem:[#allocation8 + $0x30] sm:$0xff]
    %v201 = vld [vmem:[#allocation8 + $0x38] sm:$0xff]
    %v202 = vld [vmem:[#allocation8 + $0x40] sm:$0xff]
    %v203 = vld [vmem:[#allocation8 + $0x48] sm:$0xff]
    %v204 = vld [vmem:[#allocation8 + $0x50] sm:$0xff]
    %v205 = vld [vmem:[#allocation8 + $0x58] sm:$0xff]
    %v206 = vld [vmem:[#allocation8 + $0x60] sm:$0xff]
    %v207 = vld [vmem:[#allocation8 + $0x68] sm:$0xff]
    %v208 = vld [vmem:[#allocation8 + $0x70] sm:$0xff]
    %v209 = vld [vmem:[#allocation8 + $0x78] sm:$0xff]
    %v210 = vld [vmem:[#allocation10] sm:$0xff]
    %v211 = vld [vmem:[#allocation10 + $0x8] sm:$0xff]
    %v212 = vld [vmem:[#allocation10 + $0x10] sm:$0xff]
    %v213 = vld [vmem:[#allocation10 + $0x18] sm:$0xff]
    %v214 = vld [vmem:[#allocation10 + $0x20] sm:$0xff]
    %v215 = vld [vmem:[#allocation10 + $0x28] sm:$0xff]
    %v216 = vld [vmem:[#allocation10 + $0x30] sm:$0xff]
    %v217 = vld [vmem:[#allocation10 + $0x38] sm:$0xff]
    %v218 = vld [vmem:[#allocation10 + $0x40] sm:$0xff]
    %v219 = vld [vmem:[#allocation10 + $0x48] sm:$0xff]
    %v220 = vld [vmem:[#allocation10 + $0x50] sm:$0xff]
    %v221 = vld [vmem:[#allocation10 + $0x58] sm:$0xff]
    %v222 = vld [vmem:[#allocation10 + $0x60] sm:$0xff]
    %v223 = vld [vmem:[#allocation10 + $0x68] sm:$0xff]
    %v224 = vld [vmem:[#allocation10 + $0x70] sm:$0xff]
    %v225 = vld [vmem:[#allocation10 + $0x78] sm:$0xff]
    %v226 = vld [vmem:[%s6] sm:$0x3]
    %v227 = vld [vmem:[#allocation11] sm:$0xff]
    %v228 = vld [vmem:[#allocation11 + $0x8] sm:$0xff]
    %v229 = vld [vmem:[#allocation11 + $0x10] sm:$0xff]
    %v230 = vld [vmem:[#allocation11 + $0x18] sm:$0xff]
    %v231 = vld [vmem:[#allocation11 + $0x20] sm:$0xff]
    %v232 = vld [vmem:[#allocation11 + $0x28] sm:$0xff]
    %v233 = vld [vmem:[#allocation11 + $0x30] sm:$0xff]
    %v234 = vld [vmem:[#allocation11 + $0x38] sm:$0xff]
    %v235 = vld [vmem:[#allocation11 + $0x40] sm:$0xff]
    %v236 = vld [vmem:[#allocation11 + $0x48] sm:$0xff]
    %v237 = vld [vmem:[#allocation11 + $0x50] sm:$0xff]
    %v238 = vld [vmem:[#allocation11 + $0x58] sm:$0xff]
    %v239 = vld [vmem:[#allocation11 + $0x60] sm:$0xff]
    %v240 = vld [vmem:[#allocation11 + $0x68] sm:$0xff]
    %v241 = vld [vmem:[#allocation11 + $0x70] sm:$0xff]
    %v242 = vld [vmem:[#allocation11 + $0x78] sm:$0xff]
    %v243 = vld [vmem:[#allocation13] sm:$0xff]
    %v244 = vld [vmem:[#allocation13 + $0x8] sm:$0xff]
    %v245 = vld [vmem:[#allocation13 + $0x10] sm:$0xff]
    %v246 = vld [vmem:[#allocation13 + $0x18] sm:$0xff]
    %v247 = vld [vmem:[#allocation13 + $0x20] sm:$0xff]
    %v248 = vld [vmem:[#allocation13 + $0x28] sm:$0xff]
    %v249 = vld [vmem:[#allocation13 + $0x30] sm:$0xff]
    %v250 = vld [vmem:[#allocation13 + $0x38] sm:$0xff]
    %v251 = vld [vmem:[#allocation13 + $0x40] sm:$0xff]
    %v252 = vld [vmem:[#allocation13 + $0x48] sm:$0xff]
    %v253 = vld [vmem:[#allocation13 + $0x50] sm:$0xff]
    %v254 = vld [vmem:[#allocation13 + $0x58] sm:$0xff]
    %v255 = vld [vmem:[#allocation13 + $0x60] sm:$0xff]
    %v256 = vld [vmem:[#allocation13 + $0x68] sm:$0xff]
    %v257 = vld [vmem:[#allocation13 + $0x70] sm:$0xff]
    %v258 = vld [vmem:[#allocation13 + $0x78] sm:$0xff]
    %v259 = vld [vmem:[%s9] sm:$0x3]
    loop: start=0, step=1, limit=6
    $region70: #{tpu_custom_call.1} parent=1 // loop_pre_header
      _
    $region71: #{tpu_custom_call.1} parent=1 // loop_header
      %s261 = sphi 0, %s265
      %p262 = scmp.ge.s32.totalorder %s261, 6
      %v266 = vphi 0.0, %v472
      %v267 = vphi 0.0, %v621
      %v268 = vphi 0.0, %v767
      %v269 = vphi 0.0, %v466
      %v270 = vphi 0.0, %v615
      %v271 = vphi 0.0, %v761
      %v272 = vphi 0.0, %v893
      %v273 = vphi 0.0, %v916
    $region72: #{tpu_custom_call.1} parent=1 // loop_header_branch
      %264 = sbr.rel (%p262) target = $region76
    $region73: #{tpu_custom_call.1} parent=1 // loop_body
      %v276 = vrot.slane %v273, 7
      %vm277 = vcmask 1041409
      %v278 = vsel %vm277, %v276, %v272
      %vm279 = vcmask 523264
      %v280 = vsel %vm279, %v278, 0
      %282 = vmatpush.msra.mxu0 0.0
      %283 = vmatpush.msra.mxu0 0.0
      %284 = vmatpush.msra.mxu0 0.0
      %285 = vmatpush.msra.mxu0 0.0
      %286 = vmatpush.msra.mxu0 0.0
      %287 = vmatpush.msra.mxu0 0.0
      %288 = vmatpush.msra.mxu0 0.0
      %289 = vmatpush.msra.mxu0 0.0
      %290 = vmatpush.msra.mxu0 %v175
      %291 = vmatpush.msra.mxu0 %v173
      %292 = vmatpush.msra.mxu0 %v171
      %293 = vmatpush.msra.mxu0 %v169
      %294 = vmatpush.msra.mxu0 %v167
      %295 = vmatpush.msra.mxu0 %v165
      %296 = vmatpush.msra.mxu0 %v163
      %297 = vmatpush.msra.mxu0 %v161
      %298 = vmatmul.f32.gmra.mxu0 %v280
      %v299 = vpop.f32.mrf.mxu0
      %v300 = vadd.f32 0.0, %v299
      %301 = vdwg.mxu0
      %302 = vmatpush.msra.mxu0 0.0
      %303 = vmatpush.msra.mxu0 0.0
      %304 = vmatpush.msra.mxu0 0.0
      %305 = vmatpush.msra.mxu0 0.0
      %306 = vmatpush.msra.mxu0 0.0
      %307 = vmatpush.msra.mxu0 0.0
      %308 = vmatpush.msra.mxu0 0.0
      %309 = vmatpush.msra.mxu0 0.0
      %310 = vmatpush.msra.mxu0 %v176
      %311 = vmatpush.msra.mxu0 %v174
      %312 = vmatpush.msra.mxu0 %v172
      %313 = vmatpush.msra.mxu0 %v170
      %314 = vmatpush.msra.mxu0 %v168
      %315 = vmatpush.msra.mxu0 %v166
      %316 = vmatpush.msra.mxu0 %v164
      %317 = vmatpush.msra.mxu0 %v162
      %318 = vmatmul.f32.gmra.mxu0 %v280
      %v319 = vpop.f32.mrf.mxu0
      %v320 = vadd.f32 0.0, %v319
      %321 = vdwg.mxu0
      %v323 = vsel %vm279, %v268, 0
      %325 = vmatpush.msra.mxu0 0.0
      %326 = vmatpush.msra.mxu0 0.0
      %327 = vmatpush.msra.mxu0 0.0
      %328 = vmatpush.msra.mxu0 0.0
      %329 = vmatpush.msra.mxu0 0.0
      %330 = vmatpush.msra.mxu0 0.0
      %331 = vmatpush.msra.mxu0 0.0
      %332 = vmatpush.msra.mxu0 0.0
      %333 = vmatpush.msra.mxu0 %v159
      %334 = vmatpush.msra.mxu0 %v157
      %335 = vmatpush.msra.mxu0 %v155
      %336 = vmatpush.msra.mxu0 %v153
      %337 = vmatpush.msra.mxu0 %v151
      %338 = vmatpush.msra.mxu0 %v149
      %339 = vmatpush.msra.mxu0 %v147
      %340 = vmatpush.msra.mxu0 %v145
      %341 = vmatmul.f32.gmra.mxu0 %v323
      %v342 = vpop.f32.mrf.mxu0
      %v343 = vadd.f32 %v300, %v342
      %344 = vdwg.mxu0
      %345 = vmatpush.msra.mxu0 0.0
      %346 = vmatpush.msra.mxu0 0.0
      %347 = vmatpush.msra.mxu0 0.0
      %348 = vmatpush.msra.mxu0 0.0
      %349 = vmatpush.msra.mxu0 0.0
      %350 = vmatpush.msra.mxu0 0.0
      %351 = vmatpush.msra.mxu0 0.0
      %352 = vmatpush.msra.mxu0 0.0
      %353 = vmatpush.msra.mxu0 %v160
      %354 = vmatpush.msra.mxu0 %v158
      %355 = vmatpush.msra.mxu0 %v156
      %356 = vmatpush.msra.mxu0 %v154
      %357 = vmatpush.msra.mxu0 %v152
      %358 = vmatpush.msra.mxu0 %v150
      %359 = vmatpush.msra.mxu0 %v148
      %360 = vmatpush.msra.mxu0 %v146
      %361 = vmatmul.f32.gmra.mxu0 %v323
      %v362 = vpop.f32.mrf.mxu0
      %v363 = vadd.f32 %v320, %v362
      %364 = vdwg.mxu0
      %v366 = vsel %vm279, %v266, 0
      %368 = vmatpush.msra.mxu0 0.0
      %369 = vmatpush.msra.mxu0 0.0
      %370 = vmatpush.msra.mxu0 0.0
      %371 = vmatpush.msra.mxu0 0.0
      %372 = vmatpush.msra.mxu0 0.0
      %373 = vmatpush.msra.mxu0 0.0
      %374 = vmatpush.msra.mxu0 0.0
      %375 = vmatpush.msra.mxu0 0.0
      %376 = vmatpush.msra.mxu0 %v191
      %377 = vmatpush.msra.mxu0 %v189
      %378 = vmatpush.msra.mxu0 %v187
      %379 = vmatpush.msra.mxu0 %v185
      %380 = vmatpush.msra.mxu0 %v183
      %381 = vmatpush.msra.mxu0 %v181
      %382 = vmatpush.msra.mxu0 %v179
      %383 = vmatpush.msra.mxu0 %v177
      %384 = vmatmul.f32.gmra.mxu0 %v366
      %v385 = vpop.f32.mrf.mxu0
      %v386 = vadd.f32 0.0, %v385
      %387 = vdwg.mxu0
      %388 = vmatpush.msra.mxu0 0.0
      %389 = vmatpush.msra.mxu0 0.0
      %390 = vmatpush.msra.mxu0 0.0
      %391 = vmatpush.msra.mxu0 0.0
      %392 = vmatpush.msra.mxu0 0.0
      %393 = vmatpush.msra.mxu0 0.0
      %394 = vmatpush.msra.mxu0 0.0
      %395 = vmatpush.msra.mxu0 0.0
      %396 = vmatpush.msra.mxu0 %v192
      %397 = vmatpush.msra.mxu0 %v190
      %398 = vmatpush.msra.mxu0 %v188
      %399 = vmatpush.msra.mxu0 %v186
      %400 = vmatpush.msra.mxu0 %v184
      %401 = vmatpush.msra.mxu0 %v182
      %402 = vmatpush.msra.mxu0 %v180
      %403 = vmatpush.msra.mxu0 %v178
      %404 = vmatmul.f32.gmra.mxu0 %v366
      %v405 = vpop.f32.mrf.mxu0
      %v406 = vadd.f32 0.0, %v405
      %407 = vdwg.mxu0
      %v408 = vadd.f32 %v343, %v386
      %v409 = vadd.f32 %v363, %v406
      %v411 = vperm.slane %v193, 0
      %v412 = vperm.slane %v193, 1
      %v415 = vadd.f32 %v408, %v411
      %v416 = vadd.f32 %v409, %v412
      %v417 = vxor.u32 %v415, 2147483648
      %v418 = vxor.u32 %v416, 2147483648
      %v419 = vmul.f32 %v417, 1.442695
      %v420 = vpow.pop %v419
      %v421 = vmul.f32 %v418, 1.442695
      %v422 = vpow.pop %v421
      %v423 = vadd.f32 %v420, 1.0
      %v424 = vadd.f32 %v422, 1.0
      %v425 = vrcp.pop %v423
      %v426 = vmul.f32 %v423, %v425
      %v427 = vsub.f32 1.0, %v426
      %v428 = vmul.f32 %v425, %v427
      %v429 = vadd.f32 %v425, %v428
      %vm430 = vweird.f32 %v423
      %vm431 = vweird.f32 %v425
      %vm432 = vmor %vm430, %vm431
      %v433 = vsel %vm432, %v425, %v429
      %v434 = vand.u32 2147483647, %v423
      %vm435 = vcmp.eq.f32.partialorder %v434, 8.507059e+37
      %v436 = vand.u32 %v423, 2147483648
      %v437 = vor.u32 1.1754944e-38, %v436
      %v438 = vsel %vm435, %v437, %v433
      %v439 = vmul.f32 1.0, %v438
      %v440 = vrcp.pop %v424
      %v441 = vmul.f32 %v424, %v440
      %v442 = vsub.f32 1.0, %v441
      %v443 = vmul.f32 %v440, %v442
      %v444 = vadd.f32 %v440, %v443
      %vm445 = vweird.f32 %v424
      %vm446 = vweird.f32 %v440
      %vm447 = vmor %vm445, %vm446
      %v448 = vsel %vm447, %v440, %v444
      %v449 = vand.u32 2147483647, %v424
      %vm450 = vcmp.eq.f32.partialorder %v449, 8.507059e+37
      %v451 = vand.u32 %v424, 2147483648
      %v452 = vor.u32 1.1754944e-38, %v451
      %v453 = vsel %vm450, %v452, %v448
      %v454 = vmul.f32 1.0, %v453
      %v455 = vtanh.pop %v416
      %v456 = vmul.f32 %v439, %v269
      %458 = vrot.lane.b32.xlu0 %v455, 64
      %v459 = vpop.permute.xlu0 %458
      %v461 = vmul.f32 %v439, %v459
      %463 = vrot.lane.b32.xlu0 %v461, 64
      %v464 = vpop.permute.xlu0 %463
      %v466 = vadd.f32 %v456, %v464
      %v467 = vtanh.pop %v466
      %469 = vrot.lane.b32.xlu0 %v467, 64
      %v470 = vpop.permute.xlu0 %469
      %v472 = vmul.f32 %v454, %v470
      %v474 = vsel %vm279, %v267, 0
      %476 = vmatpush.msra.mxu0 0.0
      %477 = vmatpush.msra.mxu0 0.0
      %478 = vmatpush.msra.mxu0 0.0
      %479 = vmatpush.msra.mxu0 0.0
      %480 = vmatpush.msra.mxu0 0.0
      %481 = vmatpush.msra.mxu0 0.0
      %482 = vmatpush.msra.mxu0 0.0
      %483 = vmatpush.msra.mxu0 0.0
      %484 = vmatpush.msra.mxu0 %v224
      %485 = vmatpush.msra.mxu0 %v222
      %486 = vmatpush.msra.mxu0 %v220
      %487 = vmatpush.msra.mxu0 %v218
      %488 = vmatpush.msra.mxu0 %v216
      %489 = vmatpush.msra.mxu0 %v214
      %490 = vmatpush.msra.mxu0 %v212
      %491 = vmatpush.msra.mxu0 %v210
      %492 = vmatmul.f32.gmra.mxu0 %v474
      %v493 = vpop.f32.mrf.mxu0
      %v494 = vadd.f32 0.0, %v493
      %495 = vdwg.mxu0
      %496 = vmatpush.msra.mxu0 0.0
      %497 = vmatpush.msra.mxu0 0.0
      %498 = vmatpush.msra.mxu0 0.0
      %499 = vmatpush.msra.mxu0 0.0
      %500 = vmatpush.msra.mxu0 0.0
      %501 = vmatpush.msra.mxu0 0.0
      %502 = vmatpush.msra.mxu0 0.0
      %503 = vmatpush.msra.mxu0 0.0
      %504 = vmatpush.msra.mxu0 %v225
      %505 = vmatpush.msra.mxu0 %v223
      %506 = vmatpush.msra.mxu0 %v221
      %507 = vmatpush.msra.mxu0 %v219
      %508 = vmatpush.msra.mxu0 %v217
      %509 = vmatpush.msra.mxu0 %v215
      %510 = vmatpush.msra.mxu0 %v213
      %511 = vmatpush.msra.mxu0 %v211
      %512 = vmatmul.f32.gmra.mxu0 %v474
      %v513 = vpop.f32.mrf.mxu0
      %v514 = vadd.f32 0.0, %v513
      %515 = vdwg.mxu0
      %v517 = vsel %vm279, %v472, 0
      %519 = vmatpush.msra.mxu0 0.0
      %520 = vmatpush.msra.mxu0 0.0
      %521 = vmatpush.msra.mxu0 0.0
      %522 = vmatpush.msra.mxu0 0.0
      %523 = vmatpush.msra.mxu0 0.0
      %524 = vmatpush.msra.mxu0 0.0
      %525 = vmatpush.msra.mxu0 0.0
      %526 = vmatpush.msra.mxu0 0.0
      %527 = vmatpush.msra.mxu0 %v208
      %528 = vmatpush.msra.mxu0 %v206
      %529 = vmatpush.msra.mxu0 %v204
      %530 = vmatpush.msra.mxu0 %v202
      %531 = vmatpush.msra.mxu0 %v200
      %532 = vmatpush.msra.mxu0 %v198
      %533 = vmatpush.msra.mxu0 %v196
      %534 = vmatpush.msra.mxu0 %v194
      %535 = vmatmul.f32.gmra.mxu0 %v517
      %v536 = vpop.f32.mrf.mxu0
      %v537 = vadd.f32 %v494, %v536
      %538 = vdwg.mxu0
      %539 = vmatpush.msra.mxu0 0.0
      %540 = vmatpush.msra.mxu0 0.0
      %541 = vmatpush.msra.mxu0 0.0
      %542 = vmatpush.msra.mxu0 0.0
      %543 = vmatpush.msra.mxu0 0.0
      %544 = vmatpush.msra.mxu0 0.0
      %545 = vmatpush.msra.mxu0 0.0
      %546 = vmatpush.msra.mxu0 0.0
      %547 = vmatpush.msra.mxu0 %v209
      %548 = vmatpush.msra.mxu0 %v207
      %549 = vmatpush.msra.mxu0 %v205
      %550 = vmatpush.msra.mxu0 %v203
      %551 = vmatpush.msra.mxu0 %v201
      %552 = vmatpush.msra.mxu0 %v199
      %553 = vmatpush.msra.mxu0 %v197
      %554 = vmatpush.msra.mxu0 %v195
      %555 = vmatmul.f32.gmra.mxu0 %v517
      %v556 = vpop.f32.mrf.mxu0
      %v557 = vadd.f32 %v514, %v556
      %558 = vdwg.mxu0
      %v560 = vperm.slane %v226, 0
      %v561 = vperm.slane %v226, 1
      %v564 = vadd.f32 %v537, %v560
      %v565 = vadd.f32 %v557, %v561
      %v566 = vxor.u32 %v564, 2147483648
      %v567 = vxor.u32 %v565, 2147483648
      %v568 = vmul.f32 %v566, 1.442695
      %v569 = vpow.pop %v568
      %v570 = vmul.f32 %v567, 1.442695
      %v571 = vpow.pop %v570
      %v572 = vadd.f32 %v569, 1.0
      %v573 = vadd.f32 %v571, 1.0
      %v574 = vrcp.pop %v572
      %v575 = vmul.f32 %v572, %v574
      %v576 = vsub.f32 1.0, %v575
      %v577 = vmul.f32 %v574, %v576
      %v578 = vadd.f32 %v574, %v577
      %vm579 = vweird.f32 %v572
      %vm580 = vweird.f32 %v574
      %vm581 = vmor %vm579, %vm580
      %v582 = vsel %vm581, %v574, %v578
      %v583 = vand.u32 2147483647, %v572
      %vm584 = vcmp.eq.f32.partialorder %v583, 8.507059e+37
      %v585 = vand.u32 %v572, 2147483648
      %v586 = vor.u32 1.1754944e-38, %v585
      %v587 = vsel %vm584, %v586, %v582
      %v588 = vmul.f32 1.0, %v587
      %v589 = vrcp.pop %v573
      %v590 = vmul.f32 %v573, %v589
      %v591 = vsub.f32 1.0, %v590
      %v592 = vmul.f32 %v589, %v591
      %v593 = vadd.f32 %v589, %v592
      %vm594 = vweird.f32 %v573
      %vm595 = vweird.f32 %v589
      %vm596 = vmor %vm594, %vm595
      %v597 = vsel %vm596, %v589, %v593
      %v598 = vand.u32 2147483647, %v573
      %vm599 = vcmp.eq.f32.partialorder %v598, 8.507059e+37
      %v600 = vand.u32 %v573, 2147483648
      %v601 = vor.u32 1.1754944e-38, %v600
      %v602 = vsel %vm599, %v601, %v597
      %v603 = vmul.f32 1.0, %v602
      %v604 = vtanh.pop %v565
      %v605 = vmul.f32 %v588, %v270
      %607 = vrot.lane.b32.xlu0 %v604, 64
      %v608 = vpop.permute.xlu0 %607
      %v610 = vmul.f32 %v588, %v608
      %612 = vrot.lane.b32.xlu0 %v610, 64
      %v613 = vpop.permute.xlu0 %612
      %v615 = vadd.f32 %v605, %v613
      %v616 = vtanh.pop %v615
      %618 = vrot.lane.b32.xlu0 %v616, 64
      %v619 = vpop.permute.xlu0 %618
      %v621 = vmul.f32 %v603, %v619
      %622 = vmatpush.msra.mxu0 0.0
      %623 = vmatpush.msra.mxu0 0.0
      %624 = vmatpush.msra.mxu0 0.0
      %625 = vmatpush.msra.mxu0 0.0
      %626 = vmatpush.msra.mxu0 0.0
      %627 = vmatpush.msra.mxu0 0.0
      %628 = vmatpush.msra.mxu0 0.0
      %629 = vmatpush.msra.mxu0 0.0
      %630 = vmatpush.msra.mxu0 %v257
      %631 = vmatpush.msra.mxu0 %v255
      %632 = vmatpush.msra.mxu0 %v253
      %633 = vmatpush.msra.mxu0 %v251
      %634 = vmatpush.msra.mxu0 %v249
      %635 = vmatpush.msra.mxu0 %v247
      %636 = vmatpush.msra.mxu0 %v245
      %637 = vmatpush.msra.mxu0 %v243
      %638 = vmatmul.f32.gmra.mxu0 %v323
      %v639 = vpop.f32.mrf.mxu0
      %v640 = vadd.f32 0.0, %v639
      %641 = vdwg.mxu0
      %642 = vmatpush.msra.mxu0 0.0
      %643 = vmatpush.msra.mxu0 0.0
      %644 = vmatpush.msra.mxu0 0.0
      %645 = vmatpush.msra.mxu0 0.0
      %646 = vmatpush.msra.mxu0 0.0
      %647 = vmatpush.msra.mxu0 0.0
      %648 = vmatpush.msra.mxu0 0.0
      %649 = vmatpush.msra.mxu0 0.0
      %650 = vmatpush.msra.mxu0 %v258
      %651 = vmatpush.msra.mxu0 %v256
      %652 = vmatpush.msra.mxu0 %v254
      %653 = vmatpush.msra.mxu0 %v252
      %654 = vmatpush.msra.mxu0 %v250
      %655 = vmatpush.msra.mxu0 %v248
      %656 = vmatpush.msra.mxu0 %v246
      %657 = vmatpush.msra.mxu0 %v244
      %658 = vmatmul.f32.gmra.mxu0 %v323
      %v659 = vpop.f32.mrf.mxu0
      %v660 = vadd.f32 0.0, %v659
      %661 = vdwg.mxu0
      %v663 = vsel %vm279, %v621, 0
      %665 = vmatpush.msra.mxu0 0.0
      %666 = vmatpush.msra.mxu0 0.0
      %667 = vmatpush.msra.mxu0 0.0
      %668 = vmatpush.msra.mxu0 0.0
      %669 = vmatpush.msra.mxu0 0.0
      %670 = vmatpush.msra.mxu0 0.0
      %671 = vmatpush.msra.mxu0 0.0
      %672 = vmatpush.msra.mxu0 0.0
      %673 = vmatpush.msra.mxu0 %v241
      %674 = vmatpush.msra.mxu0 %v239
      %675 = vmatpush.msra.mxu0 %v237
      %676 = vmatpush.msra.mxu0 %v235
      %677 = vmatpush.msra.mxu0 %v233
      %678 = vmatpush.msra.mxu0 %v231
      %679 = vmatpush.msra.mxu0 %v229
      %680 = vmatpush.msra.mxu0 %v227
      %681 = vmatmul.f32.gmra.mxu0 %v663
      %v682 = vpop.f32.mrf.mxu0
      %v683 = vadd.f32 %v640, %v682
      %684 = vdwg.mxu0
      %685 = vmatpush.msra.mxu0 0.0
      %686 = vmatpush.msra.mxu0 0.0
      %687 = vmatpush.msra.mxu0 0.0
      %688 = vmatpush.msra.mxu0 0.0
      %689 = vmatpush.msra.mxu0 0.0
      %690 = vmatpush.msra.mxu0 0.0
      %691 = vmatpush.msra.mxu0 0.0
      %692 = vmatpush.msra.mxu0 0.0
      %693 = vmatpush.msra.mxu0 %v242
      %694 = vmatpush.msra.mxu0 %v240
      %695 = vmatpush.msra.mxu0 %v238
      %696 = vmatpush.msra.mxu0 %v236
      %697 = vmatpush.msra.mxu0 %v234
      %698 = vmatpush.msra.mxu0 %v232
      %699 = vmatpush.msra.mxu0 %v230
      %700 = vmatpush.msra.mxu0 %v228
      %701 = vmatmul.f32.gmra.mxu0 %v663
      %v702 = vpop.f32.mrf.mxu0
      %v703 = vadd.f32 %v660, %v702
      %704 = vdwg.mxu0
      %v706 = vperm.slane %v259, 0
      %v707 = vperm.slane %v259, 1
      %v710 = vadd.f32 %v683, %v706
      %v711 = vadd.f32 %v703, %v707
      %v712 = vxor.u32 %v710, 2147483648
      %v713 = vxor.u32 %v711, 2147483648
      %v714 = vmul.f32 %v712, 1.442695
      %v715 = vpow.pop %v714
      %v716 = vmul.f32 %v713, 1.442695
      %v717 = vpow.pop %v716
      %v718 = vadd.f32 %v715, 1.0
      %v719 = vadd.f32 %v717, 1.0
      %v720 = vrcp.pop %v718
      %v721 = vmul.f32 %v718, %v720
      %v722 = vsub.f32 1.0, %v721
      %v723 = vmul.f32 %v720, %v722
      %v724 = vadd.f32 %v720, %v723
      %vm725 = vweird.f32 %v718
      %vm726 = vweird.f32 %v720
      %vm727 = vmor %vm725, %vm726
      %v728 = vsel %vm727, %v720, %v724
      %v729 = vand.u32 2147483647, %v718
      %vm730 = vcmp.eq.f32.partialorder %v729, 8.507059e+37
      %v731 = vand.u32 %v718, 2147483648
      %v732 = vor.u32 1.1754944e-38, %v731
      %v733 = vsel %vm730, %v732, %v728
      %v734 = vmul.f32 1.0, %v733
      %v735 = vrcp.pop %v719
      %v736 = vmul.f32 %v719, %v735
      %v737 = vsub.f32 1.0, %v736
      %v738 = vmul.f32 %v735, %v737
      %v739 = vadd.f32 %v735, %v738
      %vm740 = vweird.f32 %v719
      %vm741 = vweird.f32 %v735
      %vm742 = vmor %vm740, %vm741
      %v743 = vsel %vm742, %v735, %v739
      %v744 = vand.u32 2147483647, %v719
      %vm745 = vcmp.eq.f32.partialorder %v744, 8.507059e+37
      %v746 = vand.u32 %v719, 2147483648
      %v747 = vor.u32 1.1754944e-38, %v746
      %v748 = vsel %vm745, %v747, %v743
      %v749 = vmul.f32 1.0, %v748
      %v750 = vtanh.pop %v711
      %v751 = vmul.f32 %v734, %v271
      %753 = vrot.lane.b32.xlu0 %v750, 64
      %v754 = vpop.permute.xlu0 %753
      %v756 = vmul.f32 %v734, %v754
      %758 = vrot.lane.b32.xlu0 %v756, 64
      %v759 = vpop.permute.xlu0 %758
      %v761 = vadd.f32 %v751, %v759
      %v762 = vtanh.pop %v761
      %764 = vrot.lane.b32.xlu0 %v762, 64
      %v765 = vpop.permute.xlu0 %764
      %v767 = vmul.f32 %v749, %v765
      %v768 = vld [vmem:[#allocation2] sm:$0xff]
      %v769 = vld [vmem:[#allocation2 + $0x8] sm:$0xff]
      %v771 = vrot.slane %v767, 1
      %v772 = vsel %vm279, %v767, 0
      %v775 = vsel %vm279, %v768, 0
      %777 = vmatpush.xpose.msra.mxu0 0.0
      %778 = vmatpush.xpose.msra.mxu0 0.0
      %779 = vmatpush.xpose.msra.mxu0 0.0
      %780 = vmatpush.xpose.msra.mxu0 0.0
      %781 = vmatpush.xpose.msra.mxu0 0.0
      %782 = vmatpush.xpose.msra.mxu0 0.0
      %783 = vmatpush.xpose.msra.mxu0 0.0
      %784 = vmatpush.xpose.msra.mxu0 0.0
      %785 = vmatpush.xpose.msra.mxu0 0.0
      %786 = vmatpush.xpose.msra.mxu0 0.0
      %787 = vmatpush.xpose.msra.mxu0 0.0
      %788 = vmatpush.xpose.msra.mxu0 0.0
      %789 = vmatpush.xpose.msra.mxu0 0.0
      %790 = vmatpush.xpose.msra.mxu0 0.0
      %791 = vmatpush.xpose.msra.mxu0 0.0
      %792 = vmatpush.xpose.msra.mxu0 %v775
      %793 = vmatmul.f32.gmra.mxu0 %v772
      %v794 = vpop.f32.mrf.mxu0
      %v795 = vadd.f32 0.0, %v794
      %796 = vdwg.mxu0
      %v797 = vsel %vm279, %v771, 0
      %v800 = vsel %vm279, %v769, 0
      %802 = vmatpush.xpose.msra.mxu0 0.0
      %803 = vmatpush.xpose.msra.mxu0 0.0
      %804 = vmatpush.xpose.msra.mxu0 0.0
      %805 = vmatpush.xpose.msra.mxu0 0.0
      %806 = vmatpush.xpose.msra.mxu0 0.0
      %807 = vmatpush.xpose.msra.mxu0 0.0
      %808 = vmatpush.xpose.msra.mxu0 0.0
      %809 = vmatpush.xpose.msra.mxu0 0.0
      %810 = vmatpush.xpose.msra.mxu0 0.0
      %811 = vmatpush.xpose.msra.mxu0 0.0
      %812 = vmatpush.xpose.msra.mxu0 0.0
      %813 = vmatpush.xpose.msra.mxu0 0.0
      %814 = vmatpush.xpose.msra.mxu0 0.0
      %815 = vmatpush.xpose.msra.mxu0 0.0
      %816 = vmatpush.xpose.msra.mxu0 0.0
      %817 = vmatpush.xpose.msra.mxu0 %v800
      %818 = vmatmul.f32.gmra.mxu0 %v797
      %v819 = vpop.f32.mrf.mxu0
      %v820 = vadd.f32 0.0, %v819
      %821 = vdwg.mxu0
      %vm822 = vcmask 57344
      %v823 = vsel %vm822, %v795, -inf
      %824 = vmax.xlane.f32.xlu0 %v823
      %v825 = vpop.xlane.xlu0 %824
      %v826 = vsel %vm822, %v820, -inf
      %827 = vmax.xlane.f32.xlu0 %v826
      %v828 = vpop.xlane.xlu0 %827
      %v829 = vsub.f32 %v795, %v825
      %v830 = vsub.f32 %v820, %v828
      %v831 = vmul.f32 %v829, 1.442695
      %v832 = vpow.pop %v831
      %v833 = vmul.f32 %v830, 1.442695
      %v834 = vpow.pop %v833
      %v835 = vsel %vm822, %v832, 0.0
      %836 = vadd.xlane.f32.xlu0 %v835
      %v837 = vpop.xlane.xlu0 %836
      %v838 = vsel %vm822, %v834, 0.0
      %839 = vadd.xlane.f32.xlu0 %v838
      %v840 = vpop.xlane.xlu0 %839
      %v841 = vrcp.pop %v837
      %v842 = vmul.f32 %v837, %v841
      %v843 = vsub.f32 1.0, %v842
      %v844 = vmul.f32 %v841, %v843
      %v845 = vadd.f32 %v841, %v844
      %vm846 = vweird.f32 %v837
      %vm847 = vweird.f32 %v841
      %vm848 = vmor %vm846, %vm847
      %v849 = vsel %vm848, %v841, %v845
      %v850 = vand.u32 2147483647, %v837
      %vm851 = vcmp.eq.f32.partialorder %v850, 8.507059e+37
      %v852 = vand.u32 %v837, 2147483648
      %v853 = vor.u32 1.1754944e-38, %v852
      %v854 = vsel %vm851, %v853, %v849
      %v855 = vmul.f32 %v832, %v854
      %v856 = vrcp.pop %v840
      %v857 = vmul.f32 %v840, %v856
      %v858 = vsub.f32 1.0, %v857
      %v859 = vmul.f32 %v856, %v858
      %v860 = vadd.f32 %v856, %v859
      %vm861 = vweird.f32 %v840
      %vm862 = vweird.f32 %v856
      %vm863 = vmor %vm861, %vm862
      %v864 = vsel %vm863, %v856, %v860
      %v865 = vand.u32 2147483647, %v840
      %vm866 = vcmp.eq.f32.partialorder %v865, 8.507059e+37
      %v867 = vand.u32 %v840, 2147483648
      %v868 = vor.u32 1.1754944e-38, %v867
      %v869 = vsel %vm866, %v868, %v864
      %v870 = vmul.f32 %v834, %v869
      %vm871 = vcmask 64512
      %v873 = vsel %vm871, %v855, 0
      %875 = vmatpush.msra.mxu0 0.0
      %876 = vmatpush.msra.mxu0 0.0
      %877 = vmatpush.msra.mxu0 0.0
      %878 = vmatpush.msra.mxu0 0.0
      %879 = vmatpush.msra.mxu0 0.0
      %880 = vmatpush.msra.mxu0 0.0
      %881 = vmatpush.msra.mxu0 0.0
      %882 = vmatpush.msra.mxu0 0.0
      %883 = vmatpush.msra.mxu0 0.0
      %884 = vmatpush.msra.mxu0 0.0
      %885 = vmatpush.msra.mxu0 0.0
      %886 = vmatpush.msra.mxu0 0.0
      %887 = vmatpush.msra.mxu0 0.0
      %888 = vmatpush.msra.mxu0 0.0
      %889 = vmatpush.msra.mxu0 0.0
      %890 = vmatpush.msra.mxu0 %v768
      %891 = vmatmul.f32.gmra.mxu0 %v873
      %v892 = vpop.f32.mrf.mxu0
      %v893 = vadd.f32 0.0, %v892
      %894 = vdwg.mxu0
      %v896 = vsel %vm871, %v870, 0
      %898 = vmatpush.msra.mxu0 0.0
      %899 = vmatpush.msra.mxu0 0.0
      %900 = vmatpush.msra.mxu0 0.0
      %901 = vmatpush.msra.mxu0 0.0
      %902 = vmatpush.msra.mxu0 0.0
      %903 = vmatpush.msra.mxu0 0.0
      %904 = vmatpush.msra.mxu0 0.0
      %905 = vmatpush.msra.mxu0 0.0
      %906 = vmatpush.msra.mxu0 0.0
      %907 = vmatpush.msra.mxu0 0.0
      %908 = vmatpush.msra.mxu0 0.0
      %909 = vmatpush.msra.mxu0 0.0
      %910 = vmatpush.msra.mxu0 0.0
      %911 = vmatpush.msra.mxu0 0.0
      %912 = vmatpush.msra.mxu0 0.0
      %913 = vmatpush.msra.mxu0 %v769
      %914 = vmatmul.f32.gmra.mxu0 %v896
      %v915 = vpop.f32.mrf.mxu0
      %v916 = vadd.f32 0.0, %v915
      %917 = vdwg.mxu0
    $region74: #{tpu_custom_call.1} parent=1 // loop_footer
      %s265 = sadd.s32 1, %s261
    $region75: #{tpu_custom_call.1} parent=1 // loop_footer_branch
      %260 = sbr.rel target = $region71
    $region76: #{tpu_custom_call.1} parent=1 // loop_exit
      _
    %v920 = vrot.slane %v273, 7
    %vm921 = vcmask 1041409
    %v922 = vsel %vm921, %v920, %v272
    %923 = vrot.lane.b32.xlu0 %v922, 64
    %v924 = vpop.permute.xlu0 %923
    %vm926 = vcmask 523264
    %v927 = vsel %vm926, %v268, %v924
    %928 = vst [vmem:[#allocation14] sm:$0x3] %v927
    // Predicated region
    $region77: #{tpu_custom_call.1} parent=1 // pred_check
      _
    $region78: #{tpu_custom_call.1} parent=1 // pred_check_branch
      %930 = sbr.rel (0) target = $region80
    $region79: #{tpu_custom_call.1} parent=1 // pred_region
      %932 = vsyncadd [#allocation4], 0
      %s934 = sshll.u32 [#allocation14], 4
      %s935 = int_to_ptr.vmem [resolvable:$true] %s934
      %s936 = sshll.u32 %s10, 4
      %s937 = int_to_ptr.hbm [resolvable:$true] %s936
      %939 = dma.vmem_to_hbm [thread:$0]  %s935, 32, %s937, [#allocation4]
    $region80: #{tpu_custom_call.1} parent=1 // pred_fallthru
      _
    // Predicated region
    $region81: #{tpu_custom_call.1} parent=1 // pred_check
      _
    $region82: #{tpu_custom_call.1} parent=1 // pred_check_branch
      %941 = sbr.rel (0) target = $region84
    $region83: #{tpu_custom_call.1} parent=1 // pred_region
      %943 = dma.done [#allocation4], 32
    $region84: #{tpu_custom_call.1} parent=1 // pred_fallthru
      _
    %944 = vsyncpa [#allocation3], 1
    %945 = vsyncpa [#allocation6], 1
    %946 = vsyncpa [#allocation9], 1
    %947 = vsyncpa [#allocation12], 1
    %948 = vsyncpa [#allocation4], 1

</llo_original>
